<compile_context>
chip_gen: v5e
topology: v5e:2x2
jax: 0.10.0
libtpu: 0.0.40
codegen_flags: <defaults>
</compile_context>

<pallas_src>
import jax
import jax.numpy as jnp
from jax import lax
from jax.experimental import pallas as pl
from jax.experimental.pallas import tpu as pltpu

BN_EPS = 1e-5
K_COLLAPSE_LIMIT = 2048            # K above this is tiled with an accumulator
VMEM_LIMIT_BYTES = 32 * 1024 * 1024


def _round_up(x, m):
    return (x + m - 1) // m * m


def _num_tensorcores():
    """2 for megacore-style chips (v4/v5p/v7x), else 1 (v5e/v6e)."""
    try:
        kind = jax.devices()[0].device_kind.lower()
    except Exception:
        return 1
    if any(t in kind for t in ("v5 lite", "v5e", "v5litepod", "v6")):
        return 1
    if any(t in kind for t in ("v4", "v5p", "v7", "tpu7")):
        return 2
    return 1


# ----------------------------------------------------------------------------
# Pallas kernel 1: GEMM with fused bias (+residual) (+relu) epilogue.
# Used for conv1 7x7, stride-2 convs, 1x1 downsamples, the safety fallback.
# ----------------------------------------------------------------------------
def _single_k_kernel(relu, with_residual):
    """Whole K in one block: no accumulator scratch, direct output write."""
    def kernel(x_ref, w_ref, b_ref, *rest):
        if with_residual:
            r_ref, o_ref = rest
        else:
            (o_ref,) = rest
        y = jnp.dot(x_ref[...], w_ref[...], preferred_element_type=jnp.float32)
        y = y + b_ref[...]
        if with_residual:
            y = y + r_ref[...].astype(jnp.float32)
        if relu:
            y = jnp.maximum(y, 0.0)
        o_ref[...] = y.astype(o_ref.dtype)
    return kernel


def _multi_k_kernel(relu, with_residual):
    """Tiled-K path with f32 accumulator scratch (restores DMA pipelining)."""
    def kernel(x_ref, w_ref, b_ref, *rest):
        if with_residual:
            r_ref, o_ref, acc_ref = rest
        else:
            o_ref, acc_ref = rest

        @pl.when(pl.program_id(2) == 0)
        def _():
            acc_ref[...] = jnp.zeros_like(acc_ref)

        acc_ref[...] += jnp.dot(x_ref[...], w_ref[...],
                                preferred_element_type=jnp.float32)

        @pl.when(pl.program_id(2) == pl.num_programs(2) - 1)
        def _():
            y = acc_ref[...] + b_ref[...]
            if with_residual:
                y = y + r_ref[...].astype(jnp.float32)
            if relu:
                y = jnp.maximum(y, 0.0)
            o_ref[...] = y.astype(o_ref.dtype)
    return kernel


def _pick_m_tile(M):
    if M <= 512:
        return M                           # single tile, block == full dim
    for c in (512, 384, 256, 128, 64, 32, 16, 8):
        if M % c == 0:
            return c                       # divisor -> no padding copy
    return 256                             # last resort: pad M


def pallas_matmul(x, w, bias, residual=None, relu=False, out_dtype=jnp.float32):
    """out[M, N] = act(x @ w + bias (+ residual)). bf16 MXU, f32 epilogue."""
    M, K = x.shape
    K2, N = w.shape
    assert K == K2

    x = x.astype(jnp.bfloat16)
    w = w.astype(jnp.bfloat16)
    bias = bias.astype(jnp.float32)
    two_cores = _num_tensorcores() >= 2

    # ---- tile sizes (divisors of the true dims whenever possible) ----
    TM = _pick_m_tile(M)
    Mp = _round_up(M, TM)
    if N <= 512:
        TN, Np = N, N
    elif N % 256 == 0:
        TN, Np = 256, N
    else:
        TN = 128
        Np = _round_up(N, TN)

    # Megacore: expose >=2 parallel blocks only on 2-TensorCore devices and
    # never by shrinking M below a full-height MXU tile.
    if two_cores and (Mp // TM) * (Np // TN) == 1:
        if N >= 256 and (N // 2) % 128 == 0:
            TN = N // 2
        elif M >= 512 and M % 512 == 0:
            TM = M // 2

    # ---- K handling: collapse small K, tile large K with an accumulator ----
    if K <= K_COLLAPSE_LIMIT:
        collapse_k, TK, Kp = True, K, K
    else:
        collapse_k, TK = False, None
        for c in (512, 256, 128):
            if K % c == 0:
                TK = c
                break
        if TK is None:
            TK = 512
        Kp = _round_up(K, TK)

    # ---- padding (only where actually required) ----
    if (Mp, Kp) != (M, K):
        x = jnp.pad(x, ((0, Mp - M), (0, Kp - K)))
    if (Kp, Np) != (K, N):
        w = jnp.pad(w, ((0, Kp - K), (0, Np - N)))
    b2 = bias.reshape(1, N)
    if Np != N:
        b2 = jnp.pad(b2, ((0, 0), (0, Np - N)))

    with_residual = residual is not None
    if with_residual:
        r = residual.astype(jnp.bfloat16)
        if (Mp, Np) != r.shape:
            r = jnp.pad(r, ((0, Mp - M), (0, Np - N)))

    nm, nn = Mp // TM, Np // TN
    cparams = pltpu.CompilerParams(
        dimension_semantics=(("parallel", "parallel") if collapse_k
                             else ("parallel", "parallel", "arbitrary")),
        vmem_limit_bytes=VMEM_LIMIT_BYTES)

    if collapse_k:
        # Keep the larger operand tile resident; iterate the other axis fastest.
        w_tile_bytes = Kp * TN
        x_tile_bytes = TM * Kp
        if w_tile_bytes >= x_tile_bytes:          # hold weights across M tiles
            grid = (nn, nm)
            x_map = lambda j, i: (i, 0)
            w_map = lambda j, i: (0, j)
            b_map = lambda j, i: (0, j)
            o_map = lambda j, i: (i, j)
        else:                                     # hold patches across N tiles
            grid = (nm, nn)
            x_map = lambda i, j: (i, 0)
            w_map = lambda i, j: (0, j)
            b_map = lambda i, j: (0, j)
            o_map = lambda i, j: (i, j)
        in_specs = [pl.BlockSpec((TM, Kp), x_map),
                    pl.BlockSpec((Kp, TN), w_map),
                    pl.BlockSpec((1, TN), b_map)]
        inputs = [x, w, b2]
        if with_residual:
            in_specs.append(pl.BlockSpec((TM, TN), o_map))
            inputs.append(r)
        out = pl.pallas_call(
            _single_k_kernel(relu, with_residual),
            out_shape=jax.ShapeDtypeStruct((Mp, Np), out_dtype),
            grid_spec=pltpu.PrefetchScalarGridSpec(
                num_scalar_prefetch=0, grid=grid,
                in_specs=in_specs,
                out_specs=pl.BlockSpec((TM, TN), o_map)),
            compiler_params=cparams,
        )(*inputs)
    else:
        grid = (nm, nn, Kp // TK)
        in_specs = [pl.BlockSpec((TM, TK), lambda i, j, k: (i, k)),
                    pl.BlockSpec((TK, TN), lambda i, j, k: (k, j)),
                    pl.BlockSpec((1, TN), lambda i, j, k: (0, j))]
        inputs = [x, w, b2]
        if with_residual:
            in_specs.append(pl.BlockSpec((TM, TN), lambda i, j, k: (i, j)))
            inputs.append(r)
        out = pl.pallas_call(
            _multi_k_kernel(relu, with_residual),
            out_shape=jax.ShapeDtypeStruct((Mp, Np), out_dtype),
            grid_spec=pltpu.PrefetchScalarGridSpec(
                num_scalar_prefetch=0, grid=grid,
                in_specs=in_specs,
                out_specs=pl.BlockSpec((TM, TN), lambda i, j, k: (i, j)),
                scratch_shapes=[pltpu.VMEM((TM, TN), jnp.float32)]),
            compiler_params=cparams,
        )(*inputs)

    if (Mp, Np) != (M, N):
        out = out[:M, :N]
    return out


# ----------------------------------------------------------------------------
# Pallas kernel 2: direct 3x3 stride-1 convolution (no im2col matrix in HBM).
# LHS windows are built in VMEM from three row-shifted activation slabs; the
# whole (3,3,Cin,Cout) weight block is resident across all M tiles.
# ----------------------------------------------------------------------------
def _direct_conv_kernel(relu, with_residual, TM1, Wo, Wp, Cout):
    def kernel(x_ref, w_ref, b_ref, *rest):
        if with_residual:
            r_ref, o_ref = rest
        else:
            (o_ref,) = rest
        acc = jnp.zeros((TM1 * Wo, Cout), jnp.float32)
        for ki in range(3):
            for kj in range(3):
                pieces = []
                for r in range(TM1):
                    a = r * Wp + kj
                    pieces.append(x_ref[ki, a:a + Wo, :])     # (Wo, Cin)
                lhs = pieces[0] if TM1 == 1 else jnp.concatenate(pieces, axis=0)
                acc = acc + jnp.dot(lhs, w_ref[ki, kj],
                                    preferred_element_type=jnp.float32)
        y = acc + b_ref[...]
        if with_residual:
            y = y + r_ref[...].astype(jnp.float32)
        if relu:
            y = jnp.maximum(y, 0.0)
        o_ref[...] = y.astype(o_ref.dtype)
    return kernel


def _pick_tm1(M1, Wo, Wp):
    """Divisor of M1 giving ~512 output rows per tile & legal block shapes."""
    target = max(1, 512 // max(Wo, 1))
    for c in range(min(M1, target), 0, -1):
        if M1 % c:
            continue
        full = (c == M1)
        if ((c * Wo) % 8 == 0 or full) and ((c * Wp) % 8 == 0 or full):
            return c
    return None


def conv3x3_s1_direct(x, w_folded, bias, relu, residual, out_dtype=jnp.bfloat16):
    """x: (N,H,W,Cin) bf16; w_folded: (3,3,Cin,Cout); stride 1, pad 1."""
    N, H, W, Cin = x.shape
    Cout = w_folded.shape[-1]
    Ho, Wo, Wp = H, W, W + 2
    M1 = N * Ho
    M = M1 * Wo
    TM1 = _pick_tm1(M1, Wo, Wp)
    if TM1 is None:
        return None                          # caller falls back to im2col GEMM

    xp = jnp.pad(x, ((0, 0), (1, 1), (1, 1), (0, 0)))
    # Three row-shifted slabs: a block of TM1*Wp rows covers TM1 consecutive
    # (n, ho) output rows at padded width Wp (row r, padded col p -> r*Wp + p).
    slabs = jnp.stack([xp[:, ki:ki + Ho] for ki in range(3)], axis=0)
    slabs = slabs.reshape(3, M1 * Wp, Cin).astype(jnp.bfloat16)

    w_folded = w_folded.astype(jnp.bfloat16)
    b2 = bias.astype(jnp.float32).reshape(1, Cout)

    with_residual = residual is not None
    in_specs = [
        pl.BlockSpec((3, TM1 * Wp, Cin), lambda i: (0, i, 0)),
        pl.BlockSpec((3, 3, Cin, Cout), lambda i: (0, 0, 0, 0)),  # held in VMEM
        pl.BlockSpec((1, Cout), lambda i: (0, 0)),
    ]
    inputs = [slabs, w_folded, b2]
    if with_residual:
        r = residual.reshape(M, Cout).astype(jnp.bfloat16)
        in_specs.append(pl.BlockSpec((TM1 * Wo, Cout), lambda i: (i, 0)))
        inputs.append(r)

    out = pl.pallas_call(
        _direct_conv_kernel(relu, with_residual, TM1, Wo, Wp, Cout),
        out_shape=jax.ShapeDtypeStruct((M, Cout), out_dtype),
        grid_spec=pltpu.PrefetchScalarGridSpec(
            num_scalar_prefetch=0, grid=(M1 // TM1,),
            in_specs=in_specs,
            out_specs=pl.BlockSpec((TM1 * Wo, Cout), lambda i: (i, 0))),
        compiler_params=pltpu.CompilerParams(
            dimension_semantics=("parallel",),
            vmem_limit_bytes=VMEM_LIMIT_BYTES),
    )(*inputs)
    return out.reshape(N, Ho, Wo, Cout)


# ----------------------------------------------------------------------------
# Pallas kernel 3: fused global-average-pool + FC head (lane-dense output)
# ----------------------------------------------------------------------------
def _head_kernel(inv_hw):
    def kernel(x_ref, w_ref, b_ref, o_ref):
        pooled = jnp.sum(x_ref[...].astype(jnp.float32), axis=1) * inv_hw
        y = jnp.dot(pooled, w_ref[...], preferred_element_type=jnp.float32)
        o_ref[...] = y + b_ref[...]
    return kernel


def avgpool_fc(x, fc_w, fc_b):
    """x: (N, H, W, C) -> logits (N, num_classes) f32."""
    N, H, W, C = x.shape
    HW = H * W
    num_classes = fc_w.shape[1]
    Np = _round_up(max(num_classes, 128), 128)
    w = fc_w.astype(jnp.float32)
    b = fc_b.astype(jnp.float32).reshape(1, num_classes)
    if Np != num_classes:
        w = jnp.pad(w, ((0, 0), (0, Np - num_classes)))
        b = jnp.pad(b, ((0, 0), (0, Np - num_classes)))
    xf = x.reshape(N, HW, C)
    out = pl.pallas_call(
        _head_kernel(1.0 / HW),
        out_shape=jax.ShapeDtypeStruct((N, Np), jnp.float32),
        grid_spec=pltpu.PrefetchScalarGridSpec(
            num_scalar_prefetch=0, grid=(1,),
            in_specs=[pl.BlockSpec((N, HW, C), lambda i: (0, 0, 0)),
                      pl.BlockSpec((C, Np), lambda i: (0, 0)),
                      pl.BlockSpec((1, Np), lambda i: (0, 0))],
            out_specs=pl.BlockSpec((N, Np), lambda i: (0, 0))),
        compiler_params=pltpu.CompilerParams(
            vmem_limit_bytes=VMEM_LIMIT_BYTES),
    )(xf, w, b)
    return out[:, :num_classes]


# ----------------------------------------------------------------------------
# Glue: im2col (stride-2 path only), pooling, BN folding
# ----------------------------------------------------------------------------
def im2col(x, kh, kw, stride, pad):
    # x: (N,H,W,C) -> (N*Ho*Wo, kh*kw*C), patch index order (ki, kj, cin)
    N, H, W, C = x.shape
    xp = jnp.pad(x, ((0, 0), (pad, pad), (pad, pad), (0, 0)))
    Ho = (H + 2 * pad - kh) // stride + 1
    Wo = (W + 2 * pad - kw) // stride + 1
    cols = []
    for i in range(kh):
        for j in range(kw):
            cols.append(xp[:, i:i + stride * Ho:stride,
                           j:j + stride * Wo:stride, :])
    patches = jnp.stack(cols, axis=3)                # (N, Ho, Wo, kh*kw, C)
    return patches.reshape(N * Ho * Wo, kh * kw * C), (N, Ho, Wo)


def maxpool2d(x, k=3, stride=2, pad=1):
    init = jnp.array(-jnp.inf, dtype=x.dtype)
    return lax.reduce_window(x, init, lax.max,
                             window_dimensions=(1, k, k, 1),
                             window_strides=(1, stride, stride, 1),
                             padding=((0, 0), (pad, pad), (pad, pad), (0, 0)))


def fold_bn(bn):
    scale = bn["gamma"] / jnp.sqrt(bn["var"] + BN_EPS)
    bias = bn["beta"] - bn["mean"] * scale
    return scale, bias


def conv_bn_act(x, w, bn, stride, pad, relu, residual=None,
                out_dtype=jnp.bfloat16):
    kh, kw, cin, cout = w.shape
    scale, bias = fold_bn(bn)
    w_folded = w * scale[None, None, None, :]       # BN scale folded into weights

    if kh == 3 and kw == 3 and stride == 1 and pad == 1:
        try:
            out = conv3x3_s1_direct(x, w_folded, bias, relu, residual,
                                    out_dtype=out_dtype)
            if out is not None:
                return out
        except Exception:
            # TODO(synk): fall back to the im2col GEMM if Mosaic rejects a
            # layout for an unusual shape; keeps the script robust.
            pass

    patches, (N, Ho, Wo) = im2col(x, kh, kw, stride, pad)
    res_flat = None
    if residual is not None:
        res_flat = residual.reshape(N * Ho * Wo, cout)
    out = pallas_matmul(patches, w_folded.reshape(kh * kw * cin, cout), bias,
                        residual=res_flat, relu=relu, out_dtype=out_dtype)
    return out.reshape(N, Ho, Wo, cout)


def basic_block(x, blk):
    identity = x
    s = blk["stride"]
    out = conv_bn_act(x, blk["conv1_w"], blk["bn1"], stride=s, pad=1, relu=True)
    if "down_w" in blk:
        identity = conv_bn_act(x, blk["down_w"], blk["down_bn"],
                               stride=s, pad=0, relu=False)
    # conv2 + bn2 + residual add + relu fused in one Pallas epilogue
    out = conv_bn_act(out, blk["conv2_w"], blk["bn2"], stride=1, pad=1,
                      relu=True, residual=identity)
    return out


# ----------------------------------------------------------------------------
# Parameter init (deterministic, ResNet-18 shapes, PyTorch-style init)
# ----------------------------------------------------------------------------
def init_params(key, num_classes):
    keys = iter(jax.random.split(key, 64))

    def conv_w(kh, kw, cin, cout):
        fan_in = kh * kw * cin
        return (jax.random.normal(next(keys), (kh, kw, cin, cout), jnp.float32)
                * jnp.sqrt(2.0 / fan_in))

    def bn_p(c):
        return {"gamma": jnp.ones((c,), jnp.float32),
                "beta": jnp.zeros((c,), jnp.float32),
                "mean": jnp.zeros((c,), jnp.float32),
                "var": jnp.ones((c,), jnp.float32)}

    params = {"conv1_w": conv_w(7, 7, 3, 64), "bn1": bn_p(64)}
    layers = []
    plan = [(64, 64, 1), (64, 128, 2), (128, 256, 2), (256, 512, 2)]
    for cin, cout, stride in plan:
        blocks = []
        for b in range(2):
            s = stride if b == 0 else 1
            bcin = cin if b == 0 else cout
            blk = {"stride": s,
                   "conv1_w": conv_w(3, 3, bcin, cout), "bn1": bn_p(cout),
                   "conv2_w": conv_w(3, 3, cout, cout), "bn2": bn_p(cout)}
            if s != 1 or bcin != cout:
                blk["down_w"] = conv_w(1, 1, bcin, cout)
                blk["down_bn"] = bn_p(cout)
            blocks.append(blk)
        layers.append(blocks)
    params["layers"] = layers

    lim = 1.0 / jnp.sqrt(512.0)
    params["fc_w"] = jax.random.uniform(next(keys), (512, num_classes),
                                        jnp.float32, -lim, lim)
    params["fc_b"] = jax.random.uniform(next(keys), (num_classes,),
                                        jnp.float32, -lim, lim)
    return params


# ----------------------------------------------------------------------------
# Forward (= LegoClassifierModel.forward, inference)
# ----------------------------------------------------------------------------
def lego_classifier_forward(params, x_nchw):
    # NCHW -> NHWC, bf16 activations end-to-end (f32 accumulate/epilogue)
    x = jnp.transpose(x_nchw, (0, 2, 3, 1)).astype(jnp.bfloat16)
    x = conv_bn_act(x, params["conv1_w"], params["bn1"],
                    stride=2, pad=3, relu=True)
    x = maxpool2d(x, k=3, stride=2, pad=1)
    for layer in params["layers"]:
        for blk in layer:
            x = basic_block(x, blk)
    return avgpool_fc(x, params["fc_w"], params["fc_b"])   # (N, num_classes) f32


if __name__ == "__main__":
    num_classes = 10
    key = jax.random.PRNGKey(0)
    kp, kx = jax.random.split(key)
    params = init_params(kp, num_classes)
    x = jax.random.normal(kx, (2, 3, 16, 16), jnp.float32)  # NCHW, like PyTorch

    logits = lego_classifier_forward(params, x)
    logits = jax.block_until_ready(logits)
    assert logits.shape == (2, num_classes)
    assert jnp.all(jnp.isfinite(logits))
    print("KERNEL_OK")
</pallas_src>

<mosaic_0001>
module attributes {stable_mosaic.version = 11 : i64} {
  func.func @kernel(%arg0: i32, %arg1: i32, %arg2: memref<128x147xbf16, #tpu.memory_space<vmem>>, %arg3: memref<147x64xbf16, #tpu.memory_space<vmem>>, %arg4: memref<1x64xf32, #tpu.memory_space<vmem>>, %arg5: memref<128x64xbf16, #tpu.memory_space<vmem>>) attributes {dimension_semantics = [#tpu.dimension_semantics<parallel>, #tpu.dimension_semantics<parallel>], iteration_bounds = array<i64: 1, 1>, scalar_prefetch = 0 : i64, scratch_operands = 0 : i64, tpu.core_type = #tpu.core_type<tc>, window_params = [{transform_indices = @transform_0, window_bounds = array<i64: 128, 147>}, {transform_indices = @transform_1, window_bounds = array<i64: 147, 64>}, {transform_indices = @transform_2, window_bounds = array<i64: 1, 64>}, {transform_indices = @transform_3, window_bounds = array<i64: 128, 64>}]} {
    %c0 = arith.constant 0 : index
    %c0_0 = arith.constant 0 : index
    %0 = vector.load %arg2[%c0, %c0_0] : memref<128x147xbf16, #tpu.memory_space<vmem>>, vector<128x147xbf16>
    %c0_1 = arith.constant 0 : index
    %c0_2 = arith.constant 0 : index
    %1 = vector.load %arg3[%c0_1, %c0_2] : memref<147x64xbf16, #tpu.memory_space<vmem>>, vector<147x64xbf16>
    %cst = arith.constant dense<0.000000e+00> : vector<128x64xf32>
    %2 = tpu.matmul %0, %1, %cst {dimension_numbers = #tpu.dot_dimension_numbers<[1], [0], [0], [1], [0, 0, 1, 1], [], []>} : vector<128x147xbf16>, vector<147x64xbf16>, vector<128x64xf32> -> vector<128x64xf32>
    %c0_3 = arith.constant 0 : index
    %c0_4 = arith.constant 0 : index
    %3 = vector.load %arg4[%c0_3, %c0_4] : memref<1x64xf32, #tpu.memory_space<vmem>>, vector<1x64xf32>
    %4 = vector.broadcast %3 : vector<1x64xf32> to vector<128x64xf32>
    %5 = arith.addf %2, %4 : vector<128x64xf32>
    %cst_5 = arith.constant 0.000000e+00 : f32
    %6 = vector.broadcast %cst_5 : f32 to vector<128x64xf32>
    %7 = arith.maximumf %5, %6 : vector<128x64xf32>
    %8 = arith.truncf %7 : vector<128x64xf32> to vector<128x64xbf16>
    %c0_6 = arith.constant 0 : index
    %c0_7 = arith.constant 0 : index
    %9 = vector.load %arg5[%c0_6, %c0_7] : memref<128x64xbf16, #tpu.memory_space<vmem>>, vector<128x64xbf16>
    tpu.vector_store %arg5[%c0_6, %c0_7], %8 {strides = array<i32>} : memref<128x64xbf16, #tpu.memory_space<vmem>>, vector<128x64xbf16>,
    return
  }
  func.func @transform_0(%arg0: i32, %arg1: i32) -> (i32, i32) {
    %c0_i32 = arith.constant 0 : i32
    %c0_i32_0 = arith.constant 0 : i32
    return %arg0, %c0_i32 : i32, i32
  }
  func.func @transform_1(%arg0: i32, %arg1: i32) -> (i32, i32) {
    %c0_i32 = arith.constant 0 : i32
    %c0_i32_0 = arith.constant 0 : i32
    return %c0_i32, %arg1 : i32, i32
  }
  func.func @transform_2(%arg0: i32, %arg1: i32) -> (i32, i32) {
    %c0_i32 = arith.constant 0 : i32
    %c0_i32_0 = arith.constant 0 : i32
    return %c0_i32, %arg1 : i32, i32
  }
  func.func @transform_3(%arg0: i32, %arg1: i32) -> (i32, i32) {
    %c0_i32 = arith.constant 0 : i32
    return %arg0, %arg1 : i32, i32
  }
}

</mosaic_0001>

<llo_original>
// kernel: tpu_custom_call.1
$region0: #{tpu_custom_call.1}
  #allocation0 [shape = 'u32[]', space=smem, size = 0x4, offset = 0x4, fixed_abs, tag = 'smem constant byte address 0x4 - core index']
  #allocation1 [shape = 'u32[72,128]{1,0:T(1,128)}', space=vmem, size = 0x9000, scoped, tag = 'internal scratch']
  %s0 = inlined_call_operand.vmem [shape: bf16[128,147], index: 0, kind: input, shape index: {}]
  %s1 = inlined_call_operand.vmem [shape: bf16[147,64], index: 1, kind: input, shape index: {}]
  %s2 = inlined_call_operand.vmem [shape: f32[1,64], index: 2, kind: input, shape index: {}]
  %s3 = inlined_call_operand.vmem [shape: bf16[128,64], index: 3, kind: output, shape index: {}]
  %s4 = sld [smem:[#allocation0]]
  $region22: #{tpu_custom_call.1} parent=0
    _
  %s6 = ssub.s32 1, %s4
  %s7 = scalar_select 0, %s6, %s4
  // Predicated region
  $region2: #{tpu_custom_call.1} parent=0 // pred_check
    _
  $region3: #{tpu_custom_call.1} parent=0 // pred_check_branch
    %9 = sbr.rel (0) target = $region5
  $region4: #{tpu_custom_call.1} parent=0 // pred_region
    _
  $region5: #{tpu_custom_call.1} parent=0 // pred_fallthru
    _
  // Predicated region
  $region6: #{tpu_custom_call.1} parent=0 // pred_check
    _
  $region7: #{tpu_custom_call.1} parent=0 // pred_check_branch
    %11 = sbr.rel (0) target = $region9
  $region8: #{tpu_custom_call.1} parent=0 // pred_region
    _
  $region9: #{tpu_custom_call.1} parent=0 // pred_fallthru
    _
  // Predicated region
  $region10: #{tpu_custom_call.1} parent=0 // pred_check
    _
  $region11: #{tpu_custom_call.1} parent=0 // pred_check_branch
    %13 = sbr.rel (0) target = $region13
  $region12: #{tpu_custom_call.1} parent=0 // pred_region
    _
  $region13: #{tpu_custom_call.1} parent=0 // pred_fallthru
    _
  %v15 = vld [vmem:[%s0] sm:$0xff]
  %v16 = vld [vmem:[%s0 + $0x8] sm:$0xff]
  %v17 = vld [vmem:[%s0 + $0x10] sm:$0xff]
  %v18 = vld [vmem:[%s0 + $0x18] sm:$0xff]
  %v19 = vld [vmem:[%s0 + $0x20] sm:$0xff]
  %v20 = vld [vmem:[%s0 + $0x28] sm:$0xff]
  %v21 = vld [vmem:[%s0 + $0x30] sm:$0xff]
  %v22 = vld [vmem:[%s0 + $0x38] sm:$0xff]
  %v23 = vld [vmem:[%s0 + $0x40] sm:$0xff]
  %v24 = vld [vmem:[%s0 + $0x48] sm:$0xff]
  %v25 = vld [vmem:[%s0 + $0x50] sm:$0xff]
  %v26 = vld [vmem:[%s0 + $0x58] sm:$0xff]
  %v27 = vld [vmem:[%s0 + $0x60] sm:$0xff]
  %v28 = vld [vmem:[%s0 + $0x68] sm:$0xff]
  %v29 = vld [vmem:[%s0 + $0x70] sm:$0xff]
  %v30 = vld [vmem:[%s0 + $0x78] sm:$0xff]
  %v31 = vld [vmem:[%s1] sm:$0xf]
  %v32 = vld [vmem:[%s1 + $0x4] sm:$0xf]
  %v33 = vld [vmem:[%s1 + $0x8] sm:$0xf]
  %v34 = vld [vmem:[%s1 + $0xc] sm:$0xf]
  %v35 = vld [vmem:[%s1 + $0x10] sm:$0xf]
  %v36 = vld [vmem:[%s1 + $0x14] sm:$0xf]
  %v37 = vld [vmem:[%s1 + $0x18] sm:$0xf]
  %v38 = vld [vmem:[%s1 + $0x1c] sm:$0xf]
  %v39 = vld [vmem:[%s1 + $0x20] sm:$0xf]
  %v40 = vld [vmem:[%s1 + $0x24] sm:$0xf]
  %v41 = vld [vmem:[%s1 + $0x28] sm:$0xf]
  %v42 = vld [vmem:[%s1 + $0x2c] sm:$0xf]
  %v43 = vld [vmem:[%s1 + $0x30] sm:$0xf]
  %v44 = vld [vmem:[%s1 + $0x34] sm:$0xf]
  %v45 = vld [vmem:[%s1 + $0x38] sm:$0xf]
  %v46 = vld [vmem:[%s1 + $0x3c] sm:$0xf]
  %v47 = vld [vmem:[%s1 + $0x40] sm:$0xf]
  %v48 = vld [vmem:[%s1 + $0x44] sm:$0xf]
  %v49 = vld [vmem:[%s1 + $0x48] sm:$0x3]
  %v50 = vld [vmem:[%s2] sm:$0x1]
  %v52 = vperm.slane %v50, 0
  %v70 = vunpack.c.l.b16 %v15
  %v71 = vunpack.c.h.b16 %v15
  %v72 = vunpack.c.l.b16 %v16
  %v73 = vunpack.c.h.b16 %v16
  %v74 = vunpack.c.l.b16 %v17
  %v75 = vunpack.c.h.b16 %v17
  %v76 = vunpack.c.l.b16 %v18
  %v77 = vunpack.c.h.b16 %v18
  %v78 = vunpack.c.l.b16 %v19
  %v79 = vunpack.c.h.b16 %v19
  %v80 = vunpack.c.l.b16 %v20
  %v81 = vunpack.c.h.b16 %v20
  %v82 = vunpack.c.l.b16 %v21
  %v83 = vunpack.c.h.b16 %v21
  %v84 = vunpack.c.l.b16 %v22
  %v85 = vunpack.c.h.b16 %v22
  %v86 = vunpack.c.l.b16 %v23
  %v87 = vunpack.c.h.b16 %v23
  %v88 = vunpack.c.l.b16 %v24
  %v89 = vunpack.c.h.b16 %v24
  %v90 = vunpack.c.l.b16 %v25
  %v91 = vunpack.c.h.b16 %v25
  %v92 = vunpack.c.l.b16 %v26
  %v93 = vunpack.c.h.b16 %v26
  %v94 = vunpack.c.l.b16 %v27
  %v95 = vunpack.c.h.b16 %v27
  %v96 = vunpack.c.l.b16 %v28
  %v97 = vunpack.c.h.b16 %v28
  %v98 = vunpack.c.l.b16 %v29
  %v99 = vunpack.c.h.b16 %v29
  %v100 = vunpack.c.l.b16 %v30
  %v101 = vunpack.c.h.b16 %v30
  %v102 = vpack.c.b16 %v72, %v70
  %v103 = vpack.c.b16 %v73, %v71
  %v104 = vpack.c.b16 %v76, %v74
  %v105 = vpack.c.b16 %v77, %v75
  %v106 = vpack.c.b16 %v80, %v78
  %v107 = vpack.c.b16 %v81, %v79
  %v108 = vpack.c.b16 %v84, %v82
  %v109 = vpack.c.b16 %v85, %v83
  %v110 = vpack.c.b16 %v88, %v86
  %v111 = vpack.c.b16 %v89, %v87
  %v112 = vpack.c.b16 %v92, %v90
  %v113 = vpack.c.b16 %v93, %v91
  %v114 = vpack.c.b16 %v96, %v94
  %v115 = vpack.c.b16 %v97, %v95
  %v116 = vpack.c.b16 %v100, %v98
  %v117 = vpack.c.b16 %v101, %v99
  %v145 = vunpack.c.l.b16 %v31
  %v146 = vunpack.c.l.b16 %v32
  %v147 = vunpack.c.l.b16 %v33
  %v148 = vunpack.c.l.b16 %v34
  %v149 = vunpack.c.l.b16 %v35
  %v150 = vunpack.c.l.b16 %v36
  %v151 = vunpack.c.l.b16 %v37
  %v152 = vunpack.c.l.b16 %v38
  %v153 = vunpack.c.l.b16 %v39
  %v154 = vunpack.c.l.b16 %v40
  %v155 = vunpack.c.l.b16 %v41
  %v156 = vunpack.c.l.b16 %v42
  %v157 = vunpack.c.l.b16 %v43
  %v158 = vunpack.c.l.b16 %v44
  %v159 = vunpack.c.l.b16 %v45
  %v160 = vunpack.c.l.b16 %v46
  %v161 = vunpack.c.l.b16 %v47
  %v162 = vunpack.c.l.b16 %v48
  %v163 = vunpack.c.l.b16 %v49
  %v164 = vpack.c.b16 %v146, %v145
  %v165 = vpack.c.b16 %v148, %v147
  %v166 = vpack.c.b16 %v150, %v149
  %v167 = vpack.c.b16 %v152, %v151
  %v168 = vpack.c.b16 %v154, %v153
  %v169 = vpack.c.b16 %v156, %v155
  %v170 = vpack.c.b16 %v158, %v157
  %v171 = vpack.c.b16 %v160, %v159
  %v172 = vpack.c.b16 %v162, %v161
  %v173 = vpack.c.b16 %v163, %v163
  %vm183 = vcmask 154624
  %v185 = vsel %vm183, %v103, 0
  %v188 = vsel %vm183, %v105, 0
  %v191 = vsel %vm183, %v107, 0
  %v194 = vsel %vm183, %v109, 0
  %v197 = vsel %vm183, %v111, 0
  %v200 = vsel %vm183, %v113, 0
  %v203 = vsel %vm183, %v115, 0
  %v206 = vsel %vm183, %v117, 0
  %vm208 = vcmask 1040384
  %vm209 = vcmask 1041408
  %v210 = vsel %vm208, 4294967295, 65535
  %v211 = vsel %vm209, %v210, 0
  %v213 = vand.u32 %v173, %v211
  %215 = vmatpush.bf16.msra.mxu0 %v171
  %216 = vmatpush.bf16.msra.mxu0 %v170
  %217 = vmatpush.bf16.msra.mxu0 %v169
  %218 = vmatpush.bf16.msra.mxu0 %v168
  %219 = vmatpush.bf16.msra.mxu0 %v167
  %220 = vmatpush.bf16.msra.mxu0 %v166
  %221 = vmatpush.bf16.msra.mxu0 %v165
  %222 = vmatpush.bf16.msra.mxu0 %v164
  %223 = vmatmul.bf16.gmra.mxu0 %v102
  %v224 = vpop.f32.mrf.mxu0
  %v225 = vadd.f32 %v52, %v224
  %v226 = vpop.f32.mrf.mxu0
  %v227 = vadd.f32 %v52, %v226
  %228 = vmatmul.bf16.gmra.mxu0 %v104
  %v229 = vpop.f32.mrf.mxu0
  %v230 = vadd.f32 %v52, %v229
  %v231 = vpop.f32.mrf.mxu0
  %v232 = vadd.f32 %v52, %v231
  %233 = vmatmul.bf16.gmra.mxu0 %v106
  %v234 = vpop.f32.mrf.mxu0
  %v235 = vadd.f32 %v52, %v234
  %v236 = vpop.f32.mrf.mxu0
  %v237 = vadd.f32 %v52, %v236
  %238 = vmatmul.bf16.gmra.mxu0 %v108
  %v239 = vpop.f32.mrf.mxu0
  %v240 = vadd.f32 %v52, %v239
  %v241 = vpop.f32.mrf.mxu0
  %v242 = vadd.f32 %v52, %v241
  %243 = vmatmul.bf16.gmra.mxu0 %v110
  %v244 = vpop.f32.mrf.mxu0
  %v245 = vadd.f32 %v52, %v244
  %v246 = vpop.f32.mrf.mxu0
  %v247 = vadd.f32 %v52, %v246
  %248 = vmatmul.bf16.gmra.mxu0 %v112
  %v249 = vpop.f32.mrf.mxu0
  %v250 = vadd.f32 %v52, %v249
  %v251 = vpop.f32.mrf.mxu0
  %v252 = vadd.f32 %v52, %v251
  %253 = vmatmul.bf16.gmra.mxu0 %v114
  %v254 = vpop.f32.mrf.mxu0
  %v255 = vadd.f32 %v52, %v254
  %v256 = vpop.f32.mrf.mxu0
  %v257 = vadd.f32 %v52, %v256
  %258 = vmatmul.bf16.gmra.mxu0 %v116
  %v259 = vpop.f32.mrf.mxu0
  %v260 = vadd.f32 %v52, %v259
  %v261 = vpop.f32.mrf.mxu0
  %v262 = vadd.f32 %v52, %v261
  %263 = vdwg.mxu0
  %264 = vmatpush.bf16.msra.mxu0 0
  %265 = vmatpush.bf16.msra.mxu0 0
  %266 = vmatpush.bf16.msra.mxu0 0
  %267 = vmatpush.bf16.msra.mxu0 0
  %268 = vmatpush.bf16.msra.mxu0 0
  %269 = vmatpush.bf16.msra.mxu0 0
  %270 = vmatpush.bf16.msra.mxu0 %v213
  %271 = vmatpush.bf16.msra.mxu0 %v172
  %272 = vmatmul.bf16.gmra.mxu0 %v185
  %v273 = vpop.f32.mrf.mxu0
  %v274 = vadd.f32 %v225, %v273
  %v275 = vpop.f32.mrf.mxu0
  %v276 = vadd.f32 %v227, %v275
  %277 = vmatmul.bf16.gmra.mxu0 %v188
  %v278 = vpop.f32.mrf.mxu0
  %v279 = vadd.f32 %v230, %v278
  %v280 = vpop.f32.mrf.mxu0
  %v281 = vadd.f32 %v232, %v280
  %282 = vmatmul.bf16.gmra.mxu0 %v191
  %v283 = vpop.f32.mrf.mxu0
  %v284 = vadd.f32 %v235, %v283
  %v285 = vpop.f32.mrf.mxu0
  %v286 = vadd.f32 %v237, %v285
  %287 = vmatmul.bf16.gmra.mxu0 %v194
  %v288 = vpop.f32.mrf.mxu0
  %v289 = vadd.f32 %v240, %v288
  %v290 = vpop.f32.mrf.mxu0
  %v291 = vadd.f32 %v242, %v290
  %292 = vmatmul.bf16.gmra.mxu0 %v197
  %v293 = vpop.f32.mrf.mxu0
  %v294 = vadd.f32 %v245, %v293
  %v295 = vpop.f32.mrf.mxu0
  %v296 = vadd.f32 %v247, %v295
  %297 = vmatmul.bf16.gmra.mxu0 %v200
  %v298 = vpop.f32.mrf.mxu0
  %v299 = vadd.f32 %v250, %v298
  %v300 = vpop.f32.mrf.mxu0
  %v301 = vadd.f32 %v252, %v300
  %302 = vmatmul.bf16.gmra.mxu0 %v203
  %v303 = vpop.f32.mrf.mxu0
  %v304 = vadd.f32 %v255, %v303
  %v305 = vpop.f32.mrf.mxu0
  %v306 = vadd.f32 %v257, %v305
  %307 = vmatmul.bf16.gmra.mxu0 %v206
  %v308 = vpop.f32.mrf.mxu0
  %v309 = vadd.f32 %v260, %v308
  %v310 = vpop.f32.mrf.mxu0
  %v311 = vadd.f32 %v262, %v310
  %312 = vdwg.mxu0
  %v313 = vmax.f32 %v274, 0.0
  %v314 = vmax.f32 %v276, 0.0
  %v315 = vmax.f32 %v279, 0.0
  %v316 = vmax.f32 %v281, 0.0
  %v317 = vmax.f32 %v284, 0.0
  %v318 = vmax.f32 %v286, 0.0
  %v319 = vmax.f32 %v289, 0.0
  %v320 = vmax.f32 %v291, 0.0
  %v321 = vmax.f32 %v294, 0.0
  %v322 = vmax.f32 %v296, 0.0
  %v323 = vmax.f32 %v299, 0.0
  %v324 = vmax.f32 %v301, 0.0
  %v325 = vmax.f32 %v304, 0.0
  %v326 = vmax.f32 %v306, 0.0
  %v327 = vmax.f32 %v309, 0.0
  %v328 = vmax.f32 %v311, 0.0
  %v329 = vpack.c.bf16 %v313, %v313
  %v330 = vpack.c.bf16 %v314, %v314
  %v331 = vpack.c.bf16 %v315, %v315
  %v332 = vpack.c.bf16 %v316, %v316
  %v333 = vpack.c.bf16 %v317, %v317
  %v334 = vpack.c.bf16 %v318, %v318
  %v335 = vpack.c.bf16 %v319, %v319
  %v336 = vpack.c.bf16 %v320, %v320
  %v337 = vpack.c.bf16 %v321, %v321
  %v338 = vpack.c.bf16 %v322, %v322
  %v339 = vpack.c.bf16 %v323, %v323
  %v340 = vpack.c.bf16 %v324, %v324
  %v341 = vpack.c.bf16 %v325, %v325
  %v342 = vpack.c.bf16 %v326, %v326
  %v343 = vpack.c.bf16 %v327, %v327
  %v344 = vpack.c.bf16 %v328, %v328
  %vm345 = vcmask 519168
  %346 = vst.msk [vmem:[%s3] sm:$0xf] %vm345, %v329
  %347 = vst.msk [vmem:[%s3 + $0x4] sm:$0xf] %vm345, %v330
  %348 = vst.msk [vmem:[%s3 + $0x8] sm:$0xf] %vm345, %v331
  %349 = vst.msk [vmem:[%s3 + $0xc] sm:$0xf] %vm345, %v332
  %350 = vst.msk [vmem:[%s3 + $0x10] sm:$0xf] %vm345, %v333
  %351 = vst.msk [vmem:[%s3 + $0x14] sm:$0xf] %vm345, %v334
  %352 = vst.msk [vmem:[%s3 + $0x18] sm:$0xf] %vm345, %v335
  %353 = vst.msk [vmem:[%s3 + $0x1c] sm:$0xf] %vm345, %v336
  %354 = vst.msk [vmem:[%s3 + $0x20] sm:$0xf] %vm345, %v337
  %355 = vst.msk [vmem:[%s3 + $0x24] sm:$0xf] %vm345, %v338
  %356 = vst.msk [vmem:[%s3 + $0x28] sm:$0xf] %vm345, %v339
  %357 = vst.msk [vmem:[%s3 + $0x2c] sm:$0xf] %vm345, %v340
  %358 = vst.msk [vmem:[%s3 + $0x30] sm:$0xf] %vm345, %v341
  %359 = vst.msk [vmem:[%s3 + $0x34] sm:$0xf] %vm345, %v342
  %360 = vst.msk [vmem:[%s3 + $0x38] sm:$0xf] %vm345, %v343
  %361 = vst.msk [vmem:[%s3 + $0x3c] sm:$0xf] %vm345, %v344
  // Predicated region
  $region14: #{tpu_custom_call.1} parent=0 // pred_check
    _
  $region15: #{tpu_custom_call.1} parent=0 // pred_check_branch
    %363 = sbr.rel (0) target = $region17
  $region16: #{tpu_custom_call.1} parent=0 // pred_region
    _
  $region17: #{tpu_custom_call.1} parent=0 // pred_fallthru
    _
  // Predicated region
  $region18: #{tpu_custom_call.1} parent=0 // pred_check
    _
  $region19: #{tpu_custom_call.1} parent=0 // pred_check_branch
    %365 = sbr.rel (0) target = $region21
  $region20: #{tpu_custom_call.1} parent=0 // pred_region
    _
  $region21: #{tpu_custom_call.1} parent=0 // pred_fallthru
    _

</llo_original>
